<compile_context>
chip_gen: v7x
topology: tpu7x:2x2x1
jax: 0.10.0
libtpu: 0.0.40
codegen_flags: <defaults>
</compile_context>

<pallas_src>
import functools

import jax
import jax.numpy as jnp
from jax.experimental import pallas as pl
from jax.experimental.pallas import tpu as pltpu

_LANE = 128
_STRIPE_BUDGET_BYTES = 24 * 1024 * 1024  # double-buffered (tm, N) input stripe target


def crossen_kernel(x_ref, d_ref, o_ref, *, n_rows):
    i = pl.program_id(0)
    tm = x_ref.shape[0]

    # (tm, N) row stripe; upcast (no-op for f32, real upcast for bf16 inputs)
    x = x_ref[...].astype(jnp.float32)

    # Numerically stable row-wise logsumexp over the candidate axis.
    m = jnp.max(x, axis=-1, keepdims=True)                                   # (tm, 1)
    lse = jnp.log(jnp.sum(jnp.exp(x - m), axis=-1, keepdims=True)) + m       # (tm, 1)

    # Diagonal entries x[g, g] live in the (tm, tm) diagonal block d_ref
    # (block index (i, i)); extract them with a small eye mask — O(tm^2), not O(tm*N).
    d = d_ref[...].astype(jnp.float32)                                       # (tm, tm)
    r = jax.lax.broadcasted_iota(jnp.int32, (tm, tm), 0)
    c = jax.lax.broadcasted_iota(jnp.int32, (tm, tm), 1)
    diag = jnp.sum(jnp.where(r == c, d, 0.0), axis=-1, keepdims=True)        # (tm, 1)

    # Mask rows of the ragged last block (they read unspecified padding).
    row_gid = jax.lax.broadcasted_iota(jnp.int32, (tm, 1), 0) + i * tm
    o_ref[...] = jnp.where(row_gid < n_rows, lse - diag, 0.0)


def _choose_tm(n, itemsize):
    """Row-stripe height: big enough to amortize per-step overhead, small enough
    that the double-buffered stripe fits scoped VMEM on v5e/v6e/v7x."""
    tm = _STRIPE_BUDGET_BYTES // (2 * n * itemsize)   # double-buffered input stripe
    tm = min(tm, 512)                                 # diminishing returns past ~512 rows
    tm = min(tm, max(_LANE, n // 8))                  # keep extra (tm, tm) diag fetch small
    tm = (tm // _LANE) * _LANE                        # diag block lane dim must be 128-aligned
    if tm >= n:
        return int(n)                                 # single block covering the whole matrix
    return max(int(tm), _LANE)


def cross_en(sim_matrix, *, tm=None):
    """Pallas implementation of CrossEn.forward; returns a scalar float32 loss."""
    n_rows, n_cols = sim_matrix.shape
    assert n_rows == n_cols, "CrossEn expects a square similarity matrix"
    itemsize = jnp.dtype(sim_matrix.dtype).itemsize

    if tm is None:
        tm = _choose_tm(n_rows, itemsize)
    if tm < n_rows:
        # Partial row blocks: diag block's lane dim must be a multiple of 128.
        assert tm % _LANE == 0, "tm must be a multiple of 128 unless it covers all rows"
    num_blocks = pl.cdiv(n_rows, tm)

    # Scoped VMEM: double-buffered row stripe + diagonal block + output, with headroom.
    needed = 2 * (tm * n_cols + tm * tm) * itemsize + 2 * tm * 4
    vmem_limit = int(max(32 * 1024 * 1024, needed * 5 // 4))

    out = pl.pallas_call(
        functools.partial(crossen_kernel, n_rows=n_rows),
        out_shape=jax.ShapeDtypeStruct((num_blocks * tm, 1), jnp.float32),
        grid_spec=pltpu.PrefetchScalarGridSpec(
            num_scalar_prefetch=0,
            grid=(num_blocks,),
            in_specs=[
                pl.BlockSpec((tm, n_cols), lambda i: (i, 0)),  # full row stripe
                pl.BlockSpec((tm, tm), lambda i: (i, i)),      # diagonal block
            ],
            out_specs=pl.BlockSpec((tm, 1), lambda i: (i, 0)),
        ),
        compiler_params=pltpu.CompilerParams(
            dimension_semantics=("parallel",),       # no carried state -> megacore-friendly
            vmem_limit_bytes=vmem_limit,
        ),
    )(sim_matrix, sim_matrix)

    # Tiny final reduction (num_blocks*tm values) done in plain JAX.
    return jnp.sum(out) / jnp.float32(n_rows)


def _reference_crossen(sim):
    logpt = jax.nn.log_softmax(sim, axis=-1)
    return -jnp.mean(jnp.diag(logpt))


if __name__ == "__main__":
    key = jax.random.PRNGKey(0)
    key_a, key_b = jax.random.split(key)

    # Small square similarity matrix (single-block path).
    N = 16
    sim_matrix = jax.random.normal(key_a, (N, N), dtype=jnp.float32)
    loss = cross_en(sim_matrix)
    jax.block_until_ready(loss)
    assert jnp.allclose(loss, _reference_crossen(sim_matrix), atol=1e-5, rtol=1e-5)

    # Ragged multi-block path (N not a multiple of tm) exercising row masking.
    N2 = 200
    sim_matrix2 = jax.random.normal(key_b, (N2, N2), dtype=jnp.float32)
    loss2 = cross_en(sim_matrix2, tm=128)
    jax.block_until_ready(loss2)
    assert jnp.allclose(loss2, _reference_crossen(sim_matrix2), atol=1e-5, rtol=1e-5)

    print("KERNEL_OK")
</pallas_src>

<mosaic_0001>
module attributes {stable_mosaic.version = 11 : i64} {
  func.func @crossen_kernel(%arg0: i32, %arg1: memref<16x16xf32, #tpu.memory_space<vmem>>, %arg2: memref<16x16xf32, #tpu.memory_space<vmem>>, %arg3: memref<16x1xf32, #tpu.memory_space<vmem>>) attributes {dimension_semantics = [#tpu.dimension_semantics<parallel>], iteration_bounds = array<i64: 1>, scalar_prefetch = 0 : i64, scratch_operands = 0 : i64, tpu.core_type = #tpu.core_type<tc>, window_params = [{transform_indices = @transform_0, window_bounds = array<i64: 16, 16>}, {transform_indices = @transform_1, window_bounds = array<i64: 16, 16>}, {transform_indices = @transform_2, window_bounds = array<i64: 16, 1>}]} {
    %c0 = arith.constant 0 : index
    %c0_0 = arith.constant 0 : index
    %0 = vector.load %arg1[%c0, %c0_0] : memref<16x16xf32, #tpu.memory_space<vmem>>, vector<16x16xf32>
    %cst = arith.constant dense<0xFF800000> : vector<16xf32>
    %1 = vector.multi_reduction <maximumf>, %0, %cst [1] : vector<16x16xf32> to vector<16xf32>
    %2 = vector.shape_cast %1 : vector<16xf32> to vector<16x1xf32>
    %3 = vector.broadcast %2 : vector<16x1xf32> to vector<16x16xf32>
    %4 = arith.subf %0, %3 : vector<16x16xf32>
    %5 = math.exp %4 : vector<16x16xf32>
    %cst_1 = arith.constant dense<0.000000e+00> : vector<16xf32>
    %6 = vector.multi_reduction <add>, %5, %cst_1 [1] : vector<16x16xf32> to vector<16xf32>
    %7 = vector.shape_cast %6 : vector<16xf32> to vector<16x1xf32>
    %8 = math.log %7 : vector<16x1xf32>
    %9 = arith.addf %8, %2 : vector<16x1xf32>
    %c0_2 = arith.constant 0 : index
    %c0_3 = arith.constant 0 : index
    %10 = vector.load %arg2[%c0_2, %c0_3] : memref<16x16xf32, #tpu.memory_space<vmem>>, vector<16x16xf32>
    %11 = tpu.iota {dimensions = array<i32: 0>} : vector<16x16xi32>
    %12 = tpu.iota {dimensions = array<i32: 1>} : vector<16x16xi32>
    %13 = arith.cmpi eq, %11, %12 : vector<16x16xi32>
    %cst_4 = arith.constant 0.000000e+00 : f32
    %14 = vector.broadcast %cst_4 : f32 to vector<16x16xf32>
    %15 = arith.select %13, %10, %14 : vector<16x16xi1>, vector<16x16xf32>
    %cst_5 = arith.constant dense<0.000000e+00> : vector<16xf32>
    %16 = vector.multi_reduction <add>, %15, %cst_5 [1] : vector<16x16xf32> to vector<16xf32>
    %17 = vector.shape_cast %16 : vector<16xf32> to vector<16x1xf32>
    %18 = tpu.iota {dimensions = array<i32: 0>} : vector<16x1xi32>
    %c16_i32 = arith.constant 16 : i32
    %19 = arith.muli %arg0, %c16_i32 : i32
    %20 = vector.broadcast %19 : i32 to vector<16x1xi32>
    %21 = arith.addi %18, %20 : vector<16x1xi32>
    %c16_i32_6 = arith.constant 16 : i32
    %22 = vector.broadcast %c16_i32_6 : i32 to vector<16x1xi32>
    %23 = arith.cmpi slt, %21, %22 : vector<16x1xi32>
    %24 = arith.subf %9, %17 : vector<16x1xf32>
    %cst_7 = arith.constant 0.000000e+00 : f32
    %25 = vector.broadcast %cst_7 : f32 to vector<16x1xf32>
    %26 = arith.select %23, %24, %25 : vector<16x1xi1>, vector<16x1xf32>
    %c0_8 = arith.constant 0 : index
    %c0_9 = arith.constant 0 : index
    %27 = vector.load %arg3[%c0_8, %c0_9] : memref<16x1xf32, #tpu.memory_space<vmem>>, vector<16x1xf32>
    tpu.vector_store %arg3[%c0_8, %c0_9], %26 {strides = array<i32>} : memref<16x1xf32, #tpu.memory_space<vmem>>, vector<16x1xf32>,
    return
  }
  func.func @transform_0(%arg0: i32) -> (i32, i32) {
    %c0_i32 = arith.constant 0 : i32
    %c0_i32_0 = arith.constant 0 : i32
    return %arg0, %c0_i32 : i32, i32
  }
  func.func @transform_1(%arg0: i32) -> (i32, i32) {
    %c0_i32 = arith.constant 0 : i32
    return %arg0, %arg0 : i32, i32
  }
  func.func @transform_2(%arg0: i32) -> (i32, i32) {
    %c0_i32 = arith.constant 0 : i32
    %c0_i32_0 = arith.constant 0 : i32
    return %arg0, %c0_i32 : i32, i32
  }
}

</mosaic_0001>

<llo_original>
// kernel: tpu_custom_call.1
$region0: #{tpu_custom_call.1}
  #allocation0 [shape = 'u32[]', space=smem, size = 0x4, offset = 0x4, fixed_abs, tag = 'smem constant byte address 0x4 - core index']
  #allocation1 [shape = 'u32[144,128]{1,0:T(1,128)}', space=vmem, size = 0x12000, scoped, tag = 'internal scratch']
  %s0 = inlined_call_operand.hbm [shape: f32[16,16], index: 0, kind: input, shape index: {}]
  %s1 = inlined_call_operand.hbm [shape: f32[16,16], index: 1, kind: input, shape index: {}]
  %s2 = inlined_call_operand.vmem [shape: f32[16,1], index: 2, kind: output, shape index: {}]
  %s3 = sld [smem:[#allocation0]]
  $region26: #{tpu_custom_call.1} parent=0
    _
  %s5 = ssub.s32 1, %s3
  %s6 = scalar_select 0, %s5, %s3
  $region1: #{tpu_custom_call.1} parent=0
    #allocation2 [shape = 'u8[8192]{0}', space=vmem, size = 0x2000, scoped, tag = 'input window, operand 0, single buffered']
    #allocation3 [shape = 's32[1]{0}', space=sflag, size = 0x4, scoped, tag = 'scoped memory for tpu_custom_call.1']
    #allocation4 [shape = 'u8[8192]{0}', space=vmem, size = 0x2000, scoped, tag = 'input window, operand 1, single buffered']
    #allocation5 [shape = 's32[1]{0}', space=sflag, size = 0x4, scoped, tag = 'scoped memory for tpu_custom_call.1']
    %7 = vsyncpa [#allocation3], 0
    %8 = vsyncpa [#allocation5], 0
    // Predicated region
    $region2: #{tpu_custom_call.1} parent=1 // pred_check
      _
    $region3: #{tpu_custom_call.1} parent=1 // pred_check_branch
      %10 = sbr.rel (0) target = $region5
    $region4: #{tpu_custom_call.1} parent=1 // pred_region
      %s12 = ssub.s32 256, 256
      %13 = vsyncadd [#allocation3], %s12
      %s14 = sshll.u32 [#allocation2], 4
      %s15 = int_to_ptr.vmem [resolvable:$true] %s14
      %20 = dma.hbm_to_vmem [thread:$0]  %s0, 256, %s15, [#allocation3], 128, 128, 8
    $region5: #{tpu_custom_call.1} parent=1 // pred_fallthru
      _
    // Predicated region
    $region6: #{tpu_custom_call.1} parent=1 // pred_check
      _
    $region7: #{tpu_custom_call.1} parent=1 // pred_check_branch
      %22 = sbr.rel (0) target = $region9
    $region8: #{tpu_custom_call.1} parent=1 // pred_region
      %s24 = ssub.s32 256, 256
      %25 = vsyncadd [#allocation5], %s24
      %s26 = sshll.u32 [#allocation4], 4
      %s27 = int_to_ptr.vmem [resolvable:$true] %s26
      %32 = dma.hbm_to_vmem [thread:$0]  %s1, 256, %s27, [#allocation5], 128, 128, 8
    $region9: #{tpu_custom_call.1} parent=1 // pred_fallthru
      _
    // Predicated region
    $region10: #{tpu_custom_call.1} parent=1 // pred_check
      _
    $region11: #{tpu_custom_call.1} parent=1 // pred_check_branch
      %34 = sbr.rel (0) target = $region13
    $region12: #{tpu_custom_call.1} parent=1 // pred_region
      %35 = dma.done [#allocation3], 256
    $region13: #{tpu_custom_call.1} parent=1 // pred_fallthru
      _
    // Predicated region
    $region14: #{tpu_custom_call.1} parent=1 // pred_check
      _
    $region15: #{tpu_custom_call.1} parent=1 // pred_check_branch
      %37 = sbr.rel (0) target = $region17
    $region16: #{tpu_custom_call.1} parent=1 // pred_region
      %38 = dma.done [#allocation5], 256
    $region17: #{tpu_custom_call.1} parent=1 // pred_fallthru
      _
    %v39 = vld [vmem:[#allocation2] sm:$0xff]
    %v40 = vld [vmem:[#allocation2 + $0x8] sm:$0xff]
    %vm41 = vcmask 130048
    %v42 = vsel %vm41, %v39, -inf
    %43 = vmax.xlane.f32.xlu0 %v42
    %v44 = vpop.xlane.xlu0 %43
    %v45 = vsel %vm41, %v40, -inf
    %46 = vmax.xlane.f32.xlu0 %v45
    %v47 = vpop.xlane.xlu0 %46
    %v48 = vsub.f32 %v39, %v44
    %v49 = vsub.f32 %v40, %v47
    %v50 = vmul.f32 %v48, 1.442695
    %v51 = vpow.pop %v50
    %v52 = vmul.f32 %v49, 1.442695
    %v53 = vpow.pop %v52
    %v54 = vsel %vm41, %v51, 0.0
    %55 = vadd.xlane.f32.xlu0 %v54
    %v56 = vpop.xlane.xlu0 %55
    %v57 = vsel %vm41, %v53, 0.0
    %58 = vadd.xlane.f32.xlu0 %v57
    %v59 = vpop.xlane.xlu0 %58
    %v60 = vlog2.pop %v56
    %v61 = vmul.f32 %v60, 0.6931472
    %v62 = vlog2.pop %v59
    %v63 = vmul.f32 %v62, 0.6931472
    %v64 = vadd.f32 %v61, %v44
    %v65 = vadd.f32 %v63, %v47
    %v66 = vld [vmem:[#allocation4] sm:$0xff]
    %v67 = vld [vmem:[#allocation4 + $0x8] sm:$0xff]
    %v68 = vlaneseq
    %v69 = vshrl.u32 %v68, 7
    %v70 = vadd.s32 %v69, 8
    %v71 = vlaneseq
    %v72 = vand.u32 %v71, 127
    %vm73 = vcmp.eq.s32.totalorder %v69, %v72
    %vm74 = vcmp.eq.s32.totalorder %v70, %v72
    %v75 = vsel %vm73, %v66, 0.0
    %v76 = vsel %vm74, %v67, 0.0
    %v77 = vsel %vm41, %v75, 0.0
    %78 = vadd.xlane.f32.xlu0 %v77
    %v79 = vpop.xlane.xlu0 %78
    %v80 = vsel %vm41, %v76, 0.0
    %81 = vadd.xlane.f32.xlu0 %v80
    %v82 = vpop.xlane.xlu0 %81
    %s83 = smul.u32 0, 16
    %v84 = vstv %s83
    %v85 = vadd.s32 %v69, %v84
    %v86 = vadd.s32 %v70, %v84
    %vm87 = vcmp.lt.s32.totalorder %v85, 16
    %vm88 = vcmp.lt.s32.totalorder %v86, 16
    %v89 = vsub.f32 %v64, %v79
    %v90 = vsub.f32 %v65, %v82
    %v91 = vsel %vm87, %v89, 0.0
    %v92 = vsel %vm88, %v90, 0.0
    %vm93 = vcmask 7168
    %94 = vst.msk [vmem:[%s2] sm:$0xff] %vm93, %v91
    %95 = vst.msk [vmem:[%s2 + $0x8] sm:$0xff] %vm93, %v92
    // Predicated region
    $region18: #{tpu_custom_call.1} parent=1 // pred_check
      _
    $region19: #{tpu_custom_call.1} parent=1 // pred_check_branch
      %97 = sbr.rel (0) target = $region21
    $region20: #{tpu_custom_call.1} parent=1 // pred_region
      _
    $region21: #{tpu_custom_call.1} parent=1 // pred_fallthru
      _
    // Predicated region
    $region22: #{tpu_custom_call.1} parent=1 // pred_check
      _
    $region23: #{tpu_custom_call.1} parent=1 // pred_check_branch
      %99 = sbr.rel (0) target = $region25
    $region24: #{tpu_custom_call.1} parent=1 // pred_region
      _
    $region25: #{tpu_custom_call.1} parent=1 // pred_fallthru
      _
    %100 = vsyncpa [#allocation3], 1
    %101 = vsyncpa [#allocation5], 1

</llo_original>
